<compile_context>
chip_gen: v7x
topology: tpu7x:2x2x1
jax: 0.10.0
libtpu: 0.0.40
codegen_flags: <defaults>
</compile_context>

<pallas_src>
import functools

import jax
import jax.numpy as jnp
from jax.experimental import pallas as pl
from jax.experimental.pallas import tpu as pltpu

REL_THR = 0.7
REP_THR = 0.7


# --------------------------------------------------------------------------- #
# Kernels
# --------------------------------------------------------------------------- #
def _nms_kernel_packed(rep_ref, rel_ref, out_ref, *, plane_rows, width):
    """Lane-packed path: each plane is a flat stream reshaped to (plane_rows, 128).

    rep_ref/rel_ref: (R, 128) float, R = nb * plane_rows (whole planes per block)
    out_ref        : (R, 128) int8 {0, 1} maxima mask
    Requires: width < 128, 128 % width == 0 (so image rows are lane-aligned).
    """
    rep = rep_ref[...]
    rel = rel_ref[...]
    R, L = rep.shape  # L == 128
    neg_inf = jnp.asarray(-jnp.inf, dtype=rep.dtype)

    # Narrow boundary masks (no full-width iota / modulo on the hot path).
    strip = jax.lax.broadcasted_iota(jnp.int32, (R, 1), 0) % plane_rows  # (R, 1)
    lane = jax.lax.broadcasted_iota(jnp.int32, (1, L), 1)                # (1, L)

    first_strip = strip == 0                      # first sublane row of a plane
    last_strip = strip == plane_rows - 1          # last sublane row of a plane
    lane_lo = lane < width                        # needs carry from prev sublane row
    lane_hi = lane >= L - width                   # needs carry from next sublane row
    col = jnp.bitwise_and(lane, width - 1)        # width is a power of two here
    col_first = col == 0
    col_last = col == width - 1

    # ---- vertical 3-max: flat shifts by +/- width ---------------------------
    up = pltpu.roll(rep, shift=width, axis=1)             # x[f - width], same sublane row
    up_carry = pltpu.roll(up, shift=1, axis=0)            # carry from previous sublane row
    from_above = jnp.where(lane_lo, jnp.where(first_strip, neg_inf, up_carry), up)

    down = pltpu.roll(rep, shift=L - width, axis=1)       # x[f + width], same sublane row
    down_carry = pltpu.roll(down, shift=R - 1, axis=0)    # carry from next sublane row
    from_below = jnp.where(lane_hi, jnp.where(last_strip, neg_inf, down_carry), down)

    vmax = jnp.maximum(rep, jnp.maximum(from_above, from_below))

    # ---- horizontal 3-max: flat shifts by +/- 1 ------------------------------
    # Image rows are lane-aligned (128 % width == 0), so a +/-1 lane roll never
    # needs a sublane carry: the wrap positions are exactly the masked columns.
    from_left = jnp.where(col_first, neg_inf, pltpu.roll(vmax, shift=1, axis=1))
    from_right = jnp.where(col_last, neg_inf, pltpu.roll(vmax, shift=L - 1, axis=1))
    maxv = jnp.maximum(vmax, jnp.maximum(from_left, from_right))

    maxima = (rep == maxv) & (rep >= REP_THR) & (rel >= REL_THR)
    out_ref[...] = maxima.astype(jnp.int8)


def _nms_kernel_rows(rep_ref, rel_ref, out_ref, *, plane_h):
    """Row-layout path (W >= 128 or awkward W): planes stacked as (nb*H, W)."""
    rep = rep_ref[...]
    rel = rel_ref[...]
    R, W = rep.shape
    neg_inf = jnp.asarray(-jnp.inf, dtype=rep.dtype)

    # Narrow masks: (R,1) row-within-plane, (1,W) column.
    row = jax.lax.broadcasted_iota(jnp.int32, (R, 1), 0) % plane_h
    col = jax.lax.broadcasted_iota(jnp.int32, (1, W), 1)
    is_top = row == 0
    is_bottom = row == plane_h - 1
    is_left = col == 0
    is_right = col == W - 1

    # Vertical 3-max (sublane rolls); plane/block wrap is killed by the masks.
    from_below = jnp.where(is_bottom, neg_inf, pltpu.roll(rep, shift=R - 1, axis=0))
    from_above = jnp.where(is_top, neg_inf, pltpu.roll(rep, shift=1, axis=0))
    vmax = jnp.maximum(rep, jnp.maximum(from_below, from_above))

    # Horizontal 3-max (lane rolls, XLU slot).
    from_right = jnp.where(is_right, neg_inf, pltpu.roll(vmax, shift=W - 1, axis=1))
    from_left = jnp.where(is_left, neg_inf, pltpu.roll(vmax, shift=1, axis=1))
    maxv = jnp.maximum(vmax, jnp.maximum(from_right, from_left))

    maxima = (rep == maxv) & (rep >= REP_THR) & (rel >= REL_THR)
    out_ref[...] = maxima.astype(jnp.int8)


# --------------------------------------------------------------------------- #
# Block planning
# --------------------------------------------------------------------------- #
def _vmem_capacity_bytes():
    try:
        info = pltpu.get_tpu_info()
        cap = getattr(info, "vmem_capacity_bytes", None)
        if cap:
            return int(cap)
    except Exception:
        pass
    return 64 << 20  # conservative (v7x per-TensorCore)


def _largest_divisor(n, cap, rows_per_plane):
    """Largest divisor of n that is <= cap, preferring 8-aligned block rows."""
    cap = max(1, min(int(cap), n))
    best_any, best_aligned = 1, None
    for d in range(1, cap + 1):
        if n % d:
            continue
        best_any = d
        if (d * rows_per_plane) % 8 == 0 or d == n:
            best_aligned = d
    return best_aligned if best_aligned is not None else best_any


def _plan(n_planes, rows_per_plane, lanes, itemsize):
    plane_elems = rows_per_plane * lanes
    traffic_per_plane = plane_elems * (2 * itemsize + 1)      # 2 reads + int8 write
    vmem_per_plane = plane_elems * (4 * itemsize + 2)         # double-buffered in/out

    vmem_cap = _vmem_capacity_bytes()
    if vmem_cap <= (64 << 20):        # v7x-class: 64 MiB physical per TensorCore
        target_traffic = 8 << 20
        vmem_budget = 40 << 20
    else:                             # v5e / v6e: 128 MiB physical
        target_traffic = 24 << 20
        vmem_budget = 96 << 20

    cap = min(max(1, target_traffic // traffic_per_plane),
              max(1, vmem_budget // vmem_per_plane))

    # Prefer >=4 pipelined grid steps only when the total problem is big enough
    # to care (replaces the old "exactly 2 steps" halving, which hurt single-TC
    # parts and gave v7x no DMA/compute overlap).
    total_traffic = n_planes * traffic_per_plane
    if n_planes >= 4 and total_traffic > 4 * target_traffic:
        cap = min(cap, n_planes // 4)

    nb = _largest_divisor(n_planes, cap, rows_per_plane)
    block_vmem = nb * vmem_per_plane
    # TODO(synk): if a single plane's double-buffered footprint exceeds the VMEM
    # budget (very large H*W on a 64-MiB part), split H into row strips with a
    # 1-row halo instead of whole-plane blocks.
    vmem_limit = int(min(vmem_cap - (8 << 20),
                         max(16 << 20, block_vmem + (4 << 20))))
    return nb, vmem_limit, nb * traffic_per_plane


def _in_block_spec(rows, lanes, multi_buffer):
    if multi_buffer:
        try:
            return pl.BlockSpec((rows, lanes), lambda i: (i, 0),
                                pipeline_mode=pl.Buffered(3))
        except TypeError:
            pass
    return pl.BlockSpec((rows, lanes), lambda i: (i, 0))


# --------------------------------------------------------------------------- #
# Wrapper
# --------------------------------------------------------------------------- #
def nms_maxima(reliability, repeatability):
    """reliability, repeatability: [B, C, H, W] -> bool maxima mask [B, C, H, W]."""
    assert reliability.shape == repeatability.shape
    assert reliability.dtype == repeatability.dtype
    B, C, H, W = repeatability.shape
    N = B * C
    itemsize = jnp.dtype(repeatability.dtype).itemsize

    # Lane-packed path whenever image rows can be laid lane-aligned in 128-wide
    # vregs; otherwise fall back to the (rows, W) layout.
    packed = (W < 128) and (128 % W == 0) and ((H * W) % 128 == 0)
    if packed:
        lanes = 128
        rows_per_plane = (H * W) // 128
    else:
        # TODO(synk): W not a multiple of 128 here leaves vreg lanes partly idle;
        # a fully general flat repacking would need unaligned row handling.
        lanes = W
        rows_per_plane = H

    rep2d = repeatability.reshape(N * rows_per_plane, lanes)
    rel2d = reliability.reshape(N * rows_per_plane, lanes)

    nb, vmem_limit, block_traffic = _plan(N, rows_per_plane, lanes, itemsize)
    rows = nb * rows_per_plane
    grid = (N // nb,)

    if packed:
        kernel = functools.partial(_nms_kernel_packed,
                                   plane_rows=rows_per_plane, width=W)
    else:
        kernel = functools.partial(_nms_kernel_rows, plane_h=H)

    # Deeper input buffering only pays when steps are tiny and numerous.
    multibuf = (block_traffic < (1 << 20)) and (grid[0] > 3)

    out = pl.pallas_call(
        kernel,
        out_shape=jax.ShapeDtypeStruct((N * rows_per_plane, lanes), jnp.int8),
        grid_spec=pltpu.PrefetchScalarGridSpec(
            num_scalar_prefetch=0,
            grid=grid,
            in_specs=[
                _in_block_spec(rows, lanes, multibuf),
                _in_block_spec(rows, lanes, multibuf),
            ],
            out_specs=pl.BlockSpec((rows, lanes), lambda i: (i, 0)),
        ),
        compiler_params=pltpu.CompilerParams(
            dimension_semantics=("parallel",),
            vmem_limit_bytes=vmem_limit,
        ),
    )(rep2d, rel2d)

    return (out != 0).reshape(B, C, H, W)


def non_max_suppression(reliability_list, repeatability_list):
    """Mirrors NonMaxSuppression.forward: returns (y, x) coords, shape [2, K]."""
    assert len(reliability_list) == len(repeatability_list) == 1
    reliability = reliability_list[0]
    repeatability = repeatability_list[0]

    maxima = nms_maxima(reliability, repeatability)

    # nonzero().t()[2:4] == (row/H, col/W) indices of the nonzero entries.
    # Data-dependent size -> done eagerly outside the kernel.
    idx = jnp.nonzero(maxima)  # tuple of 4 index arrays (b, c, y, x)
    return jnp.stack([idx[2], idx[3]], axis=0)


# --------------------------------------------------------------------------- #
if __name__ == "__main__":
    key = jax.random.PRNGKey(0)
    k_rel, k_rep = jax.random.split(key)
    B, C, H, W = 2, 4, 16, 16

    reliability = jax.random.uniform(k_rel, (B, C, H, W), dtype=jnp.float32)
    repeatability = jax.random.uniform(k_rep, (B, C, H, W), dtype=jnp.float32)

    coords = non_max_suppression([reliability], [repeatability])
    coords = jax.block_until_ready(coords)

    # Pure-JAX reference check of the maxima mask (MaxPool2d k=3, s=1, p=1).
    def ref_maxima(rel, rep):
        h, w = rep.shape[-2:]
        rep_pad = jnp.pad(rep, ((0, 0), (0, 0), (1, 1), (1, 1)),
                          mode="constant", constant_values=-jnp.inf)
        mv = jnp.full_like(rep, -jnp.inf)
        for dy in range(3):
            for dx in range(3):
                mv = jnp.maximum(mv, rep_pad[:, :, dy:dy + h, dx:dx + w])
        return (rep == mv) & (rep >= REP_THR) & (rel >= REL_THR)

    got = jax.block_until_ready(nms_maxima(reliability, repeatability))
    want = ref_maxima(reliability, repeatability)
    assert bool(jnp.all(got == want)), "maxima mask mismatch vs reference"

    ref_idx = jnp.nonzero(want)
    ref_coords = jnp.stack([ref_idx[2], ref_idx[3]], axis=0)
    assert coords.shape == ref_coords.shape
    assert bool(jnp.all(coords == ref_coords)), "coords mismatch vs reference"

    print("KERNEL_OK")
</pallas_src>

<mosaic_0001>
module attributes {stable_mosaic.version = 11 : i64} {
  func.func @_nms_kernel_packed(%arg0: i32, %arg1: memref<16x128xf32, #tpu.memory_space<vmem>>, %arg2: memref<16x128xf32, #tpu.memory_space<vmem>>, %arg3: memref<16x128xi8, #tpu.memory_space<vmem>>) attributes {dimension_semantics = [#tpu.dimension_semantics<parallel>], iteration_bounds = array<i64: 1>, scalar_prefetch = 0 : i64, scratch_operands = 0 : i64, tpu.core_type = #tpu.core_type<tc>, window_params = [{transform_indices = @transform_0, window_bounds = array<i64: 16, 128>}, {transform_indices = @transform_1, window_bounds = array<i64: 16, 128>}, {transform_indices = @transform_2, window_bounds = array<i64: 16, 128>}]} {
    %c0 = arith.constant 0 : index
    %c0_0 = arith.constant 0 : index
    %0 = vector.load %arg1[%c0, %c0_0] : memref<16x128xf32, #tpu.memory_space<vmem>>, vector<16x128xf32>
    %c0_1 = arith.constant 0 : index
    %c0_2 = arith.constant 0 : index
    %1 = vector.load %arg2[%c0_1, %c0_2] : memref<16x128xf32, #tpu.memory_space<vmem>>, vector<16x128xf32>
    %2 = tpu.iota {dimensions = array<i32: 0>} : vector<16x1xi32>
    %c2_i32 = arith.constant 2 : i32
    %c0_i32 = arith.constant 0 : i32
    %3 = arith.cmpi eq, %c2_i32, %c0_i32 : i32
    %c1_i32 = arith.constant 1 : i32
    %4 = arith.select %3, %c1_i32, %c2_i32 : i32
    %5 = vector.broadcast %4 : i32 to vector<16x1xi32>
    %6 = arith.remsi %2, %5 : vector<16x1xi32>
    %c0_i32_3 = arith.constant 0 : i32
    %7 = vector.broadcast %c0_i32_3 : i32 to vector<16x1xi32>
    %8 = arith.cmpi ne, %6, %7 : vector<16x1xi32>
    %c0_i32_4 = arith.constant 0 : i32
    %9 = vector.broadcast %c0_i32_4 : i32 to vector<16x1xi32>
    %10 = arith.cmpi slt, %6, %9 : vector<16x1xi32>
    %c0_i32_5 = arith.constant 0 : i32
    %11 = arith.cmpi slt, %4, %c0_i32_5 : i32
    %12 = vector.broadcast %11 : i1 to vector<16x1xi1>
    %13 = vector.broadcast %12 : vector<16x1xi1> to vector<16x1xi1>
    %14 = arith.xori %10, %13 : vector<16x1xi1>
    %15 = arith.andi %14, %8 : vector<16x1xi1>
    %16 = vector.broadcast %4 : i32 to vector<16x1xi32>
    %17 = arith.addi %6, %16 : vector<16x1xi32>
    %18 = arith.select %15, %17, %6 : vector<16x1xi1>, vector<16x1xi32>
    %19 = tpu.iota {dimensions = array<i32: 1>} : vector<1x128xi32>
    %c0_i32_6 = arith.constant 0 : i32
    %20 = vector.broadcast %c0_i32_6 : i32 to vector<16x1xi32>
    %21 = arith.cmpi eq, %18, %20 : vector<16x1xi32>
    %c1_i32_7 = arith.constant 1 : i32
    %22 = vector.broadcast %c1_i32_7 : i32 to vector<16x1xi32>
    %23 = arith.cmpi eq, %18, %22 : vector<16x1xi32>
    %c16_i32 = arith.constant 16 : i32
    %24 = vector.broadcast %c16_i32 : i32 to vector<1x128xi32>
    %25 = arith.cmpi slt, %19, %24 : vector<1x128xi32>
    %c112_i32 = arith.constant 112 : i32
    %26 = vector.broadcast %c112_i32 : i32 to vector<1x128xi32>
    %27 = arith.cmpi sge, %19, %26 : vector<1x128xi32>
    %c15_i32 = arith.constant 15 : i32
    %28 = vector.broadcast %c15_i32 : i32 to vector<1x128xi32>
    %29 = arith.andi %19, %28 : vector<1x128xi32>
    %c0_i32_8 = arith.constant 0 : i32
    %30 = vector.broadcast %c0_i32_8 : i32 to vector<1x128xi32>
    %31 = arith.cmpi eq, %29, %30 : vector<1x128xi32>
    %c15_i32_9 = arith.constant 15 : i32
    %32 = vector.broadcast %c15_i32_9 : i32 to vector<1x128xi32>
    %33 = arith.cmpi eq, %29, %32 : vector<1x128xi32>
    %c16_i32_10 = arith.constant 16 : i32
    %34 = tpu.dynamic_rotate %0 by %c16_i32_10 dim 1 : vector<16x128xf32>, i32 -> vector<16x128xf32>
    %c1_i32_11 = arith.constant 1 : i32
    %35 = tpu.dynamic_rotate %34 by %c1_i32_11 dim 0 : vector<16x128xf32>, i32 -> vector<16x128xf32>
    %cst = arith.constant 0xFF800000 : f32
    %36 = vector.shape_cast %21 : vector<16x1xi1> to vector<16x1xi1>
    %37 = vector.broadcast %36 : vector<16x1xi1> to vector<16x128xi1>
    %38 = vector.broadcast %cst : f32 to vector<16x128xf32>
    %39 = arith.select %37, %38, %35 : vector<16x128xi1>, vector<16x128xf32>
    %40 = vector.shape_cast %25 : vector<1x128xi1> to vector<1x128xi1>
    %41 = vector.broadcast %40 : vector<1x128xi1> to vector<16x128xi1>
    %42 = arith.select %41, %39, %34 : vector<16x128xi1>, vector<16x128xf32>
    %c112_i32_12 = arith.constant 112 : i32
    %43 = tpu.dynamic_rotate %0 by %c112_i32_12 dim 1 : vector<16x128xf32>, i32 -> vector<16x128xf32>
    %c15_i32_13 = arith.constant 15 : i32
    %44 = tpu.dynamic_rotate %43 by %c15_i32_13 dim 0 : vector<16x128xf32>, i32 -> vector<16x128xf32>
    %cst_14 = arith.constant 0xFF800000 : f32
    %45 = vector.shape_cast %23 : vector<16x1xi1> to vector<16x1xi1>
    %46 = vector.broadcast %45 : vector<16x1xi1> to vector<16x128xi1>
    %47 = vector.broadcast %cst_14 : f32 to vector<16x128xf32>
    %48 = arith.select %46, %47, %44 : vector<16x128xi1>, vector<16x128xf32>
    %49 = vector.shape_cast %27 : vector<1x128xi1> to vector<1x128xi1>
    %50 = vector.broadcast %49 : vector<1x128xi1> to vector<16x128xi1>
    %51 = arith.select %50, %48, %43 : vector<16x128xi1>, vector<16x128xf32>
    %52 = arith.maximumf %42, %51 : vector<16x128xf32>
    %53 = arith.maximumf %0, %52 : vector<16x128xf32>
    %c1_i32_15 = arith.constant 1 : i32
    %54 = tpu.dynamic_rotate %53 by %c1_i32_15 dim 1 : vector<16x128xf32>, i32 -> vector<16x128xf32>
    %cst_16 = arith.constant 0xFF800000 : f32
    %55 = vector.shape_cast %31 : vector<1x128xi1> to vector<1x128xi1>
    %56 = vector.broadcast %55 : vector<1x128xi1> to vector<16x128xi1>
    %57 = vector.broadcast %cst_16 : f32 to vector<16x128xf32>
    %58 = arith.select %56, %57, %54 : vector<16x128xi1>, vector<16x128xf32>
    %c127_i32 = arith.constant 127 : i32
    %59 = tpu.dynamic_rotate %53 by %c127_i32 dim 1 : vector<16x128xf32>, i32 -> vector<16x128xf32>
    %cst_17 = arith.constant 0xFF800000 : f32
    %60 = vector.shape_cast %33 : vector<1x128xi1> to vector<1x128xi1>
    %61 = vector.broadcast %60 : vector<1x128xi1> to vector<16x128xi1>
    %62 = vector.broadcast %cst_17 : f32 to vector<16x128xf32>
    %63 = arith.select %61, %62, %59 : vector<16x128xi1>, vector<16x128xf32>
    %64 = arith.maximumf %58, %63 : vector<16x128xf32>
    %65 = arith.maximumf %53, %64 : vector<16x128xf32>
    %66 = arith.cmpf oeq, %0, %65 : vector<16x128xf32>
    %cst_18 = arith.constant 0.699999988 : f32
    %67 = vector.broadcast %cst_18 : f32 to vector<16x128xf32>
    %68 = arith.cmpf oge, %0, %67 : vector<16x128xf32>
    %69 = arith.andi %66, %68 : vector<16x128xi1>
    %cst_19 = arith.constant 0.699999988 : f32
    %70 = vector.broadcast %cst_19 : f32 to vector<16x128xf32>
    %71 = arith.cmpf oge, %1, %70 : vector<16x128xf32>
    %72 = arith.andi %69, %71 : vector<16x128xi1>
    %73 = arith.extui %72 : vector<16x128xi1> to vector<16x128xi8>
    %c0_20 = arith.constant 0 : index
    %c0_21 = arith.constant 0 : index
    %74 = vector.load %arg3[%c0_20, %c0_21] : memref<16x128xi8, #tpu.memory_space<vmem>>, vector<16x128xi8>
    tpu.vector_store %arg3[%c0_20, %c0_21], %73 {strides = array<i32>} : memref<16x128xi8, #tpu.memory_space<vmem>>, vector<16x128xi8>,
    return
  }
  func.func @transform_0(%arg0: i32) -> (i32, i32) {
    %c0_i32 = arith.constant 0 : i32
    %c0_i32_0 = arith.constant 0 : i32
    return %arg0, %c0_i32 : i32, i32
  }
  func.func @transform_1(%arg0: i32) -> (i32, i32) {
    %c0_i32 = arith.constant 0 : i32
    %c0_i32_0 = arith.constant 0 : i32
    return %arg0, %c0_i32 : i32, i32
  }
  func.func @transform_2(%arg0: i32) -> (i32, i32) {
    %c0_i32 = arith.constant 0 : i32
    %c0_i32_0 = arith.constant 0 : i32
    return %arg0, %c0_i32 : i32, i32
  }
}

</mosaic_0001>

<llo_original>
// kernel: tpu_custom_call.1
$region0: #{tpu_custom_call.1}
  #allocation0 [shape = 'u32[]', space=smem, size = 0x4, offset = 0x4, fixed_abs, tag = 'smem constant byte address 0x4 - core index']
  #allocation1 [shape = 'u32[144,128]{1,0:T(1,128)}', space=vmem, size = 0x12000, scoped, tag = 'internal scratch']
  %s0 = inlined_call_operand.hbm [shape: f32[16,128], index: 0, kind: input, shape index: {}]
  %s1 = inlined_call_operand.hbm [shape: f32[16,128], index: 1, kind: input, shape index: {}]
  %s2 = inlined_call_operand.hbm [shape: s8[16,128], index: 2, kind: output, shape index: {}]
  %s3 = sld [smem:[#allocation0]]
  $region26: #{tpu_custom_call.1} parent=0
    _
  %s5 = ssub.s32 1, %s3
  %s6 = scalar_select 0, %s5, %s3
  $region1: #{tpu_custom_call.1} parent=0
    #allocation2 [shape = 'u8[8192]{0}', space=vmem, size = 0x2000, scoped, tag = 'input window, operand 0, single buffered']
    #allocation3 [shape = 's32[1]{0}', space=sflag, size = 0x4, scoped, tag = 'scoped memory for tpu_custom_call.1']
    #allocation4 [shape = 's32[1]{0}', space=sflag, size = 0x4, scoped, tag = 'scoped memory for tpu_custom_call.1']
    #allocation5 [shape = 'u8[8192]{0}', space=vmem, size = 0x2000, scoped, tag = 'input window, operand 1, single buffered']
    #allocation6 [shape = 's32[1]{0}', space=sflag, size = 0x4, scoped, tag = 'scoped memory for tpu_custom_call.1']
    #allocation7 [shape = 'u8[2048]{0}', space=vmem, size = 0x800, scoped, tag = 'output window, operand 0, single buffered']
    %7 = vsyncpa [#allocation3], 0
    %8 = vsyncpa [#allocation6], 0
    %9 = vsyncpa [#allocation4], 0
    // Predicated region
    $region2: #{tpu_custom_call.1} parent=1 // pred_check
      _
    $region3: #{tpu_custom_call.1} parent=1 // pred_check_branch
      %11 = sbr.rel (0) target = $region5
    $region4: #{tpu_custom_call.1} parent=1 // pred_region
      %s13 = ssub.s32 256, 256
      %14 = vsyncadd [#allocation3], %s13
      %s15 = sshll.u32 [#allocation2], 4
      %s16 = int_to_ptr.vmem [resolvable:$true] %s15
      %21 = dma.hbm_to_vmem [thread:$0]  %s0, 256, %s16, [#allocation3], 128, 128, 8
    $region5: #{tpu_custom_call.1} parent=1 // pred_fallthru
      _
    // Predicated region
    $region6: #{tpu_custom_call.1} parent=1 // pred_check
      _
    $region7: #{tpu_custom_call.1} parent=1 // pred_check_branch
      %23 = sbr.rel (0) target = $region9
    $region8: #{tpu_custom_call.1} parent=1 // pred_region
      %s25 = ssub.s32 256, 256
      %26 = vsyncadd [#allocation6], %s25
      %s27 = sshll.u32 [#allocation5], 4
      %s28 = int_to_ptr.vmem [resolvable:$true] %s27
      %33 = dma.hbm_to_vmem [thread:$0]  %s1, 256, %s28, [#allocation6], 128, 128, 8
    $region9: #{tpu_custom_call.1} parent=1 // pred_fallthru
      _
    // Predicated region
    $region10: #{tpu_custom_call.1} parent=1 // pred_check
      _
    $region11: #{tpu_custom_call.1} parent=1 // pred_check_branch
      %35 = sbr.rel (0) target = $region13
    $region12: #{tpu_custom_call.1} parent=1 // pred_region
      %36 = dma.done [#allocation3], 256
    $region13: #{tpu_custom_call.1} parent=1 // pred_fallthru
      _
    // Predicated region
    $region14: #{tpu_custom_call.1} parent=1 // pred_check
      _
    $region15: #{tpu_custom_call.1} parent=1 // pred_check_branch
      %38 = sbr.rel (0) target = $region17
    $region16: #{tpu_custom_call.1} parent=1 // pred_region
      %39 = dma.done [#allocation6], 256
    $region17: #{tpu_custom_call.1} parent=1 // pred_fallthru
      _
    %v42 = vld [vmem:[#allocation2] sm:$0xff]
    %v43 = vld [vmem:[#allocation2 + $0x8] sm:$0xff]
    %v44 = vld [vmem:[#allocation5] sm:$0xff]
    %v45 = vld [vmem:[#allocation5 + $0x8] sm:$0xff]
    %v46 = vlaneseq
    %v47 = vshrl.u32 %v46, 7
    %v48 = vadd.s32 %v47, 8
    %vm49 = vcmp.lt.s32.totalorder %v47, 0
    %v50 = vsub.s32 0, %v47
    %v51 = vsel %vm49, %v50, %v47
    %v52 = vshrl.u32 %v51, 1
    %v53 = vand.u32 %v51, 1
    %v54 = vsub.s32 0, %v53
    %v55 = vsel %vm49, %v54, %v53
    %vm56 = vcmp.lt.s32.totalorder %v48, 0
    %v57 = vsub.s32 0, %v48
    %v58 = vsel %vm56, %v57, %v48
    %v59 = vshrl.u32 %v58, 1
    %v60 = vand.u32 %v58, 1
    %v61 = vsub.s32 0, %v60
    %v62 = vsel %vm56, %v61, %v60
    %vm63 = vcmp.ne.s32.totalorder %v55, 0
    %vm64 = vcmp.ne.s32.totalorder %v62, 0
    %vm65 = vcmp.lt.s32.totalorder %v55, 0
    %vm66 = vcmp.lt.s32.totalorder %v62, 0
    %vm67 = vmand %vm65, %vm63
    %vm68 = vmand %vm66, %vm64
    %v69 = vadd.s32 %v55, 2
    %v70 = vadd.s32 %v62, 2
    %v71 = vsel %vm67, %v69, %v55
    %v72 = vsel %vm68, %v70, %v62
    %v73 = vlaneseq
    %v74 = vand.u32 %v73, 127
    %vm75 = vcmp.eq.s32.totalorder %v71, 0
    %vm76 = vcmp.eq.s32.totalorder %v72, 0
    %vm77 = vcmp.eq.s32.totalorder %v71, 1
    %vm78 = vcmp.eq.s32.totalorder %v72, 1
    %vm79 = vcmp.lt.s32.totalorder %v74, 16
    %vm80 = vcmp.ge.s32.totalorder %v74, 112
    %v81 = vand.u32 %v74, 15
    %vm82 = vcmp.eq.s32.totalorder %v81, 0
    %vm83 = vcmp.eq.s32.totalorder %v81, 15
    %84 = vrot.lane.b32.xlu0 %v42, 16
    %v85 = vpop.permute.xlu0 %84
    %86 = vrot.lane.b32.xlu0 %v43, 16
    %v87 = vpop.permute.xlu0 %86
    %v88 = vrot.slane %v85, 7
    %v89 = vrot.slane %v87, 7
    %vm90 = vcmp.lt.s32.totalorder %v47, 1
    %v91 = vsel %vm90, %v88, %v89
    %v92 = vsel %vm90, %v89, %v88
    %v93 = vsel %vm75, 1, 0
    %v94 = vsel %vm76, 1, 0
    %vm95 = vcmp.eq.s32.totalorder %v93, 1
    %vm96 = vcmp.eq.s32.totalorder %v94, 1
    %v97 = vsel %vm95, -inf, %v92
    %v98 = vsel %vm96, -inf, %v91
    %v99 = vsel %vm79, 1, 0
    %vm100 = vcmp.eq.s32.totalorder %v99, 1
    %v101 = vsel %vm100, %v97, %v85
    %v102 = vsel %vm100, %v98, %v87
    %103 = vrot.lane.b32.xlu0 %v42, 112
    %v104 = vpop.permute.xlu0 %103
    %105 = vrot.lane.b32.xlu0 %v43, 112
    %v106 = vpop.permute.xlu0 %105
    %v107 = vrot.slane %v104, 1
    %v108 = vrot.slane %v106, 1
    %vm109 = vcmp.lt.s32.totalorder %v47, 7
    %v110 = vsel %vm109, %v107, %v108
    %v111 = vsel %vm109, %v108, %v107
    %v112 = vsel %vm77, 1, 0
    %v113 = vsel %vm78, 1, 0
    %vm114 = vcmp.eq.s32.totalorder %v112, 1
    %vm115 = vcmp.eq.s32.totalorder %v113, 1
    %v116 = vsel %vm114, -inf, %v110
    %v117 = vsel %vm115, -inf, %v111
    %v118 = vsel %vm80, 1, 0
    %vm119 = vcmp.eq.s32.totalorder %v118, 1
    %v120 = vsel %vm119, %v116, %v104
    %v121 = vsel %vm119, %v117, %v106
    %v122 = vmax.f32 %v101, %v120
    %v123 = vmax.f32 %v102, %v121
    %v124 = vmax.f32 %v42, %v122
    %v125 = vmax.f32 %v43, %v123
    %126 = vrot.lane.b32.xlu0 %v124, 1
    %v127 = vpop.permute.xlu0 %126
    %128 = vrot.lane.b32.xlu0 %v125, 1
    %v129 = vpop.permute.xlu0 %128
    %v130 = vsel %vm82, 1, 0
    %vm131 = vcmp.eq.s32.totalorder %v130, 1
    %v132 = vsel %vm131, -inf, %v127
    %v133 = vsel %vm131, -inf, %v129
    %134 = vrot.lane.b32.xlu0 %v124, 127
    %v135 = vpop.permute.xlu0 %134
    %136 = vrot.lane.b32.xlu0 %v125, 127
    %v137 = vpop.permute.xlu0 %136
    %v138 = vsel %vm83, 1, 0
    %vm139 = vcmp.eq.s32.totalorder %v138, 1
    %v140 = vsel %vm139, -inf, %v135
    %v141 = vsel %vm139, -inf, %v137
    %v142 = vmax.f32 %v132, %v140
    %v143 = vmax.f32 %v133, %v141
    %v144 = vmax.f32 %v124, %v142
    %v145 = vmax.f32 %v125, %v143
    %vm146 = vcmp.eq.f32.partialorder %v42, %v144
    %vm147 = vcmp.eq.f32.partialorder %v43, %v145
    %vm148 = vcmp.ge.f32.partialorder %v42, 0.7
    %vm149 = vcmp.ge.f32.partialorder %v43, 0.7
    %vm150 = vmand %vm146, %vm148
    %vm151 = vmand %vm147, %vm149
    %vm152 = vcmp.ge.f32.partialorder %v44, 0.7
    %vm153 = vcmp.ge.f32.partialorder %v45, 0.7
    %vm154 = vmand %vm150, %vm152
    %vm155 = vmand %vm151, %vm153
    %vm156 = vmpackc.low %vm155, %vm154
    %vm157 = vmpackc.even %vm156, %vm156
    %v158 = vsel %vm157, 16843009, 0
    %v159 = vunpack.c.0.s8 %v158
    %v160 = vunpack.c.1.s8 %v158
    %v161 = vpack.c.b16 %v159, %v159
    %v162 = vpack.c.b8 %v161, %v161
    %v163 = vpack.c.b16 %v160, %v160
    %v164 = vpack.c.b8 %v163, %v163
    %165 = vst [vmem:[#allocation7] sm:$0x3] %v162
    %166 = vst [vmem:[#allocation7 + $0x2] sm:$0x3] %v164
    // Predicated region
    $region18: #{tpu_custom_call.1} parent=1 // pred_check
      _
    $region19: #{tpu_custom_call.1} parent=1 // pred_check_branch
      %168 = sbr.rel (0) target = $region21
    $region20: #{tpu_custom_call.1} parent=1 // pred_region
      %s170 = ssub.s32 64, 64
      %171 = vsyncadd [#allocation4], %s170
      %s172 = sshll.u32 [#allocation7], 4
      %s173 = int_to_ptr.vmem [resolvable:$true] %s172
      %178 = dma.vmem_to_hbm [thread:$0]  %s173, 64, %s2, [#allocation4], 32, 32, 2
    $region21: #{tpu_custom_call.1} parent=1 // pred_fallthru
      _
    // Predicated region
    $region22: #{tpu_custom_call.1} parent=1 // pred_check
      _
    $region23: #{tpu_custom_call.1} parent=1 // pred_check_branch
      %180 = sbr.rel (0) target = $region25
    $region24: #{tpu_custom_call.1} parent=1 // pred_region
      %181 = dma.done [#allocation4], 64
    $region25: #{tpu_custom_call.1} parent=1 // pred_fallthru
      _
    %182 = vsyncpa [#allocation3], 1
    %183 = vsyncpa [#allocation6], 1
    %184 = vsyncpa [#allocation4], 1

</llo_original>
